<compile_context>
chip_gen: v5e
topology: v5e:2x2
jax: 0.10.0
libtpu: 0.0.40
codegen_flags: <defaults>
</compile_context>

<pallas_src>
import jax
import jax.numpy as jnp
import numpy as np
from jax.experimental import pallas as pl
from jax.experimental.pallas import tpu as pltpu

BN_EPS = 1e-5
H1, H2, H3, H4 = 128, 256, 128, 64
H4_PAD = 128  # lane-dense final store


def _round_up(v, m):
    return (v + m - 1) // m * m


def mlp_kernel(x_ref,
               w1_ref, b1_ref,
               w2_ref, b2_ref,
               w3_ref, b3_ref,
               w4_ref, b4_ref,
               o_ref):
    # BatchNorm(eval) folded into each Linear; Dropout(eval) is identity.
    # Matmul operands are bf16, accumulation + elementwise in f32.
    h = jnp.dot(x_ref[...], w1_ref[...],
                preferred_element_type=jnp.float32) + b1_ref[...]
    h = jnp.maximum(h, 0.0)
    h = jnp.dot(h.astype(jnp.bfloat16), w2_ref[...],
                preferred_element_type=jnp.float32) + b2_ref[...]
    h = jnp.maximum(h, 0.0)
    h = jnp.dot(h.astype(jnp.bfloat16), w3_ref[...],
                preferred_element_type=jnp.float32) + b3_ref[...]
    h = jnp.maximum(h, 0.0)
    h = jnp.dot(h.astype(jnp.bfloat16), w4_ref[...],
                preferred_element_type=jnp.float32) + b4_ref[...]
    o_ref[...] = jnp.maximum(h, 0.0)


def _fold_bn_into_linear(w, b, bn):
    """Exact eval-mode fold: BN(xW + b) == x(W*s) + ((b-mean)*s + beta)."""
    gamma, beta, mean, var = bn[0:1], bn[1:2], bn[2:3], bn[3:4]
    scale = gamma * jax.lax.rsqrt(var + BN_EPS)          # (1, N)
    return w * scale, (b - mean) * scale + beta


def mlp_forward(x, params, *, tb=256):
    """x: (B, n_inputs) float32. Returns (B, 64) float32."""
    B, C = x.shape

    # ---- parameter prep (trace time): BN fold, padding, bf16 cast ----
    w1, b1 = _fold_bn_into_linear(params['w1'], params['b1'], params['bn1'])
    w2, b2 = _fold_bn_into_linear(params['w2'], params['b2'], params['bn2'])
    w3, b3 = _fold_bn_into_linear(params['w3'], params['b3'], params['bn3'])
    w4, b4 = _fold_bn_into_linear(params['w4'], params['b4'], params['bn4'])

    # Pad input feature dim to a sublane multiple (25 -> 32); zero w1 rows.
    C_pad = _round_up(C, 8)
    w1 = jnp.pad(w1, ((0, C_pad - C), (0, 0)))
    # Pad final layer to a full 128-lane output slab (sliced back below).
    w4 = jnp.pad(w4, ((0, 0), (0, H4_PAD - H4)))
    b4 = jnp.pad(b4, ((0, 0), (0, H4_PAD - H4)))

    # bf16 matmul operands, f32 biases (bias add / ReLU stay on the f32 path).
    mm_w = tuple(w.astype(jnp.bfloat16) for w in (w1, w2, w3, w4))
    biases = (b1, b2, b3, b4)
    weights = (mm_w[0], biases[0], mm_w[1], biases[1],
               mm_w[2], biases[2], mm_w[3], biases[3])

    # ---- batch tiling: pad batch to a tile multiple, cdiv grid ----
    tb_eff = max(8, min(tb, _round_up(B, 8)))
    B_pad = _round_up(B, tb_eff)
    x_p = jnp.pad(x, ((0, B_pad - B), (0, C_pad - C))).astype(jnp.bfloat16)

    grid = (pl.cdiv(B_pad, tb_eff),)
    x_spec = pl.BlockSpec((tb_eff, C_pad), lambda i: (i, 0))
    # Weights/biases resident across all grid steps (constant index_map).
    w_specs = [pl.BlockSpec(w.shape, lambda i: (0, 0)) for w in weights]
    out_spec = pl.BlockSpec((tb_eff, H4_PAD), lambda i: (i, 0))

    flops = 2 * B_pad * (C_pad * H1 + H1 * H2 + H2 * H3 + H3 * H4_PAD)
    param_bytes = sum(int(np.prod(w.shape)) * w.dtype.itemsize for w in weights)
    bytes_accessed = 2 * B_pad * C_pad + 4 * B_pad * H4_PAD + param_bytes

    out = pl.pallas_call(
        mlp_kernel,
        out_shape=jax.ShapeDtypeStruct((B_pad, H4_PAD), jnp.float32),
        grid=grid,
        in_specs=[x_spec] + w_specs,
        out_specs=out_spec,
        compiler_params=pltpu.CompilerParams(
            dimension_semantics=("parallel",)),
        cost_estimate=pl.CostEstimate(
            flops=flops, transcendentals=0, bytes_accessed=bytes_accessed),
    )(x_p, *weights)

    return out[:B, :H4]


# ---------------- parameters (deterministic synthetic) ----------------
def init_params(key, n_inputs):
    def lin(k, fan_in, fan_out):
        k1, k2 = jax.random.split(k)
        bound = float(np.sqrt(6.0 / fan_in))              # kaiming-uniform-ish
        w = jax.random.uniform(k1, (fan_in, fan_out), jnp.float32, -bound, bound)
        b = jax.random.uniform(k2, (1, fan_out), jnp.float32,
                               -1.0 / np.sqrt(fan_in), 1.0 / np.sqrt(fan_in))
        return w, b

    def bn(k, n):
        k1, k2, k3, k4 = jax.random.split(k, 4)
        gamma = jax.random.uniform(k1, (1, n), jnp.float32, 0.8, 1.2)
        beta = 0.1 * jax.random.normal(k2, (1, n), jnp.float32)
        mean = 0.05 * jax.random.normal(k3, (1, n), jnp.float32)
        var = jax.random.uniform(k4, (1, n), jnp.float32, 0.9, 1.1)
        return jnp.concatenate([gamma, beta, mean, var], axis=0)   # (4, n)

    ks = jax.random.split(key, 8)
    w1, b1 = lin(ks[0], n_inputs, H1)
    w2, b2 = lin(ks[1], H1, H2)
    w3, b3 = lin(ks[2], H2, H3)
    w4, b4 = lin(ks[3], H3, H4)
    return dict(w1=w1, b1=b1, bn1=bn(ks[4], H1),
                w2=w2, b2=b2, bn2=bn(ks[5], H2),
                w3=w3, b3=b3, bn3=bn(ks[6], H3),
                w4=w4, b4=b4, bn4=bn(ks[7], H4))


# ---------------- pure-JAX reference (unfolded BN, eval mode, f32) ------------
def _bn_eval(x, bn):
    gamma, beta, mean, var = bn[0:1], bn[1:2], bn[2:3], bn[3:4]
    return (x - mean) * (gamma * jax.lax.rsqrt(var + BN_EPS)) + beta


def mlp_reference(x, p):
    # TODO(synk): training-mode Dropout(p=0.5) / batch-stat BatchNorm are not
    # implemented; eval-mode semantics (dropout=identity, running stats) only.
    h = jnp.maximum(_bn_eval(x @ p['w1'] + p['b1'], p['bn1']), 0.0)
    h = jnp.maximum(_bn_eval(h @ p['w2'] + p['b2'], p['bn2']), 0.0)
    h = jnp.maximum(_bn_eval(h @ p['w3'] + p['b3'], p['bn3']), 0.0)
    h = jnp.maximum(_bn_eval(h @ p['w4'] + p['b4'], p['bn4']), 0.0)
    return h


if __name__ == "__main__":
    key = jax.random.PRNGKey(0)
    k_x, k_p = jax.random.split(key)

    n_inputs = 25          # module default
    B = 16                 # small demo batch; tile clamps to 16 -> single step
    x = jax.random.normal(k_x, (B, n_inputs), jnp.float32)
    params = init_params(k_p, n_inputs)

    out = jax.block_until_ready(mlp_forward(x, params))
    ref = mlp_reference(x, params)

    # bf16 matmul operands (f32 accumulate) -> loosened tolerance vs f32 ref.
    np.testing.assert_allclose(np.asarray(out), np.asarray(ref),
                               rtol=2e-2, atol=2e-2)
    print("KERNEL_OK")
</pallas_src>

<mosaic_0001>
module attributes {stable_mosaic.version = 11 : i64} {
  func.func @mlp_kernel(%arg0: i32, %arg1: memref<16x32xbf16, #tpu.memory_space<vmem>>, %arg2: memref<32x128xbf16, #tpu.memory_space<vmem>>, %arg3: memref<1x128xf32, #tpu.memory_space<vmem>>, %arg4: memref<128x256xbf16, #tpu.memory_space<vmem>>, %arg5: memref<1x256xf32, #tpu.memory_space<vmem>>, %arg6: memref<256x128xbf16, #tpu.memory_space<vmem>>, %arg7: memref<1x128xf32, #tpu.memory_space<vmem>>, %arg8: memref<128x128xbf16, #tpu.memory_space<vmem>>, %arg9: memref<1x128xf32, #tpu.memory_space<vmem>>, %arg10: memref<16x128xf32, #tpu.memory_space<vmem>>) attributes {dimension_semantics = [#tpu.dimension_semantics<parallel>], iteration_bounds = array<i64: 1>, scalar_prefetch = 0 : i64, scratch_operands = 0 : i64, tpu.core_type = #tpu.core_type<tc>, window_params = [{transform_indices = @transform_0, window_bounds = array<i64: 16, 32>}, {pipeline_mode = #tpu.pipeline_mode<synchronous>, transform_indices = @transform_1, window_bounds = array<i64: 32, 128>}, {pipeline_mode = #tpu.pipeline_mode<synchronous>, transform_indices = @transform_2, window_bounds = array<i64: 1, 128>}, {pipeline_mode = #tpu.pipeline_mode<synchronous>, transform_indices = @transform_3, window_bounds = array<i64: 128, 256>}, {pipeline_mode = #tpu.pipeline_mode<synchronous>, transform_indices = @transform_4, window_bounds = array<i64: 1, 256>}, {pipeline_mode = #tpu.pipeline_mode<synchronous>, transform_indices = @transform_5, window_bounds = array<i64: 256, 128>}, {pipeline_mode = #tpu.pipeline_mode<synchronous>, transform_indices = @transform_6, window_bounds = array<i64: 1, 128>}, {pipeline_mode = #tpu.pipeline_mode<synchronous>, transform_indices = @transform_7, window_bounds = array<i64: 128, 128>}, {pipeline_mode = #tpu.pipeline_mode<synchronous>, transform_indices = @transform_8, window_bounds = array<i64: 1, 128>}, {transform_indices = @transform_9, window_bounds = array<i64: 16, 128>}]} {
    %c0 = arith.constant 0 : index
    %c0_0 = arith.constant 0 : index
    %0 = vector.load %arg1[%c0, %c0_0] : memref<16x32xbf16, #tpu.memory_space<vmem>>, vector<16x32xbf16>
    %c0_1 = arith.constant 0 : index
    %c0_2 = arith.constant 0 : index
    %1 = vector.load %arg2[%c0_1, %c0_2] : memref<32x128xbf16, #tpu.memory_space<vmem>>, vector<32x128xbf16>
    %cst = arith.constant dense<0.000000e+00> : vector<16x128xf32>
    %2 = tpu.matmul %0, %1, %cst {dimension_numbers = #tpu.dot_dimension_numbers<[1], [0], [0], [1], [0, 0, 1, 1], [], []>} : vector<16x32xbf16>, vector<32x128xbf16>, vector<16x128xf32> -> vector<16x128xf32>
    %c0_3 = arith.constant 0 : index
    %c0_4 = arith.constant 0 : index
    %3 = vector.load %arg3[%c0_3, %c0_4] : memref<1x128xf32, #tpu.memory_space<vmem>>, vector<1x128xf32>
    %4 = vector.broadcast %3 : vector<1x128xf32> to vector<16x128xf32>
    %5 = arith.addf %2, %4 : vector<16x128xf32>
    %cst_5 = arith.constant 0.000000e+00 : f32
    %6 = vector.broadcast %cst_5 : f32 to vector<16x128xf32>
    %7 = arith.maximumf %5, %6 : vector<16x128xf32>
    %8 = arith.truncf %7 : vector<16x128xf32> to vector<16x128xbf16>
    %c0_6 = arith.constant 0 : index
    %c0_7 = arith.constant 0 : index
    %9 = vector.load %arg4[%c0_6, %c0_7] : memref<128x256xbf16, #tpu.memory_space<vmem>>, vector<128x256xbf16>
    %cst_8 = arith.constant dense<0.000000e+00> : vector<16x256xf32>
    %10 = tpu.matmul %8, %9, %cst_8 {dimension_numbers = #tpu.dot_dimension_numbers<[1], [0], [0], [1], [0, 0, 1, 1], [], []>} : vector<16x128xbf16>, vector<128x256xbf16>, vector<16x256xf32> -> vector<16x256xf32>
    %c0_9 = arith.constant 0 : index
    %c0_10 = arith.constant 0 : index
    %11 = vector.load %arg5[%c0_9, %c0_10] : memref<1x256xf32, #tpu.memory_space<vmem>>, vector<1x256xf32>
    %12 = vector.broadcast %11 : vector<1x256xf32> to vector<16x256xf32>
    %13 = arith.addf %10, %12 : vector<16x256xf32>
    %cst_11 = arith.constant 0.000000e+00 : f32
    %14 = vector.broadcast %cst_11 : f32 to vector<16x256xf32>
    %15 = arith.maximumf %13, %14 : vector<16x256xf32>
    %16 = arith.truncf %15 : vector<16x256xf32> to vector<16x256xbf16>
    %c0_12 = arith.constant 0 : index
    %c0_13 = arith.constant 0 : index
    %17 = vector.load %arg6[%c0_12, %c0_13] : memref<256x128xbf16, #tpu.memory_space<vmem>>, vector<256x128xbf16>
    %cst_14 = arith.constant dense<0.000000e+00> : vector<16x128xf32>
    %18 = tpu.matmul %16, %17, %cst_14 {dimension_numbers = #tpu.dot_dimension_numbers<[1], [0], [0], [1], [0, 0, 1, 1], [], []>} : vector<16x256xbf16>, vector<256x128xbf16>, vector<16x128xf32> -> vector<16x128xf32>
    %c0_15 = arith.constant 0 : index
    %c0_16 = arith.constant 0 : index
    %19 = vector.load %arg7[%c0_15, %c0_16] : memref<1x128xf32, #tpu.memory_space<vmem>>, vector<1x128xf32>
    %20 = vector.broadcast %19 : vector<1x128xf32> to vector<16x128xf32>
    %21 = arith.addf %18, %20 : vector<16x128xf32>
    %cst_17 = arith.constant 0.000000e+00 : f32
    %22 = vector.broadcast %cst_17 : f32 to vector<16x128xf32>
    %23 = arith.maximumf %21, %22 : vector<16x128xf32>
    %24 = arith.truncf %23 : vector<16x128xf32> to vector<16x128xbf16>
    %c0_18 = arith.constant 0 : index
    %c0_19 = arith.constant 0 : index
    %25 = vector.load %arg8[%c0_18, %c0_19] : memref<128x128xbf16, #tpu.memory_space<vmem>>, vector<128x128xbf16>
    %cst_20 = arith.constant dense<0.000000e+00> : vector<16x128xf32>
    %26 = tpu.matmul %24, %25, %cst_20 {dimension_numbers = #tpu.dot_dimension_numbers<[1], [0], [0], [1], [0, 0, 1, 1], [], []>} : vector<16x128xbf16>, vector<128x128xbf16>, vector<16x128xf32> -> vector<16x128xf32>
    %c0_21 = arith.constant 0 : index
    %c0_22 = arith.constant 0 : index
    %27 = vector.load %arg9[%c0_21, %c0_22] : memref<1x128xf32, #tpu.memory_space<vmem>>, vector<1x128xf32>
    %28 = vector.broadcast %27 : vector<1x128xf32> to vector<16x128xf32>
    %29 = arith.addf %26, %28 : vector<16x128xf32>
    %cst_23 = arith.constant 0.000000e+00 : f32
    %30 = vector.broadcast %cst_23 : f32 to vector<16x128xf32>
    %31 = arith.maximumf %29, %30 : vector<16x128xf32>
    %c0_24 = arith.constant 0 : index
    %c0_25 = arith.constant 0 : index
    %32 = vector.load %arg10[%c0_24, %c0_25] : memref<16x128xf32, #tpu.memory_space<vmem>>, vector<16x128xf32>
    tpu.vector_store %arg10[%c0_24, %c0_25], %31 {strides = array<i32>} : memref<16x128xf32, #tpu.memory_space<vmem>>, vector<16x128xf32>,
    return
  }
  func.func @transform_0(%arg0: i32) -> (i32, i32) {
    %c0_i32 = arith.constant 0 : i32
    %c0_i32_0 = arith.constant 0 : i32
    return %arg0, %c0_i32 : i32, i32
  }
  func.func @transform_1(%arg0: i32) -> (i32, i32) {
    %c0_i32 = arith.constant 0 : i32
    %c0_i32_0 = arith.constant 0 : i32
    %c0_i32_1 = arith.constant 0 : i32
    return %c0_i32, %c0_i32_0 : i32, i32
  }
  func.func @transform_2(%arg0: i32) -> (i32, i32) {
    %c0_i32 = arith.constant 0 : i32
    %c0_i32_0 = arith.constant 0 : i32
    %c0_i32_1 = arith.constant 0 : i32
    return %c0_i32, %c0_i32_0 : i32, i32
  }
  func.func @transform_3(%arg0: i32) -> (i32, i32) {
    %c0_i32 = arith.constant 0 : i32
    %c0_i32_0 = arith.constant 0 : i32
    %c0_i32_1 = arith.constant 0 : i32
    return %c0_i32, %c0_i32_0 : i32, i32
  }
  func.func @transform_4(%arg0: i32) -> (i32, i32) {
    %c0_i32 = arith.constant 0 : i32
    %c0_i32_0 = arith.constant 0 : i32
    %c0_i32_1 = arith.constant 0 : i32
    return %c0_i32, %c0_i32_0 : i32, i32
  }
  func.func @transform_5(%arg0: i32) -> (i32, i32) {
    %c0_i32 = arith.constant 0 : i32
    %c0_i32_0 = arith.constant 0 : i32
    %c0_i32_1 = arith.constant 0 : i32
    return %c0_i32, %c0_i32_0 : i32, i32
  }
  func.func @transform_6(%arg0: i32) -> (i32, i32) {
    %c0_i32 = arith.constant 0 : i32
    %c0_i32_0 = arith.constant 0 : i32
    %c0_i32_1 = arith.constant 0 : i32
    return %c0_i32, %c0_i32_0 : i32, i32
  }
  func.func @transform_7(%arg0: i32) -> (i32, i32) {
    %c0_i32 = arith.constant 0 : i32
    %c0_i32_0 = arith.constant 0 : i32
    %c0_i32_1 = arith.constant 0 : i32
    return %c0_i32, %c0_i32_0 : i32, i32
  }
  func.func @transform_8(%arg0: i32) -> (i32, i32) {
    %c0_i32 = arith.constant 0 : i32
    %c0_i32_0 = arith.constant 0 : i32
    %c0_i32_1 = arith.constant 0 : i32
    return %c0_i32, %c0_i32_0 : i32, i32
  }
  func.func @transform_9(%arg0: i32) -> (i32, i32) {
    %c0_i32 = arith.constant 0 : i32
    %c0_i32_0 = arith.constant 0 : i32
    return %arg0, %c0_i32 : i32, i32
  }
}

</mosaic_0001>

<llo_original>
// kernel: tpu_custom_call.1
$region0: #{tpu_custom_call.1}
  #allocation0 [shape = 'u32[]', space=smem, size = 0x4, offset = 0x4, fixed_abs, tag = 'smem constant byte address 0x4 - core index']
  #allocation1 [shape = 'u32[72,128]{1,0:T(1,128)}', space=vmem, size = 0x9000, scoped, tag = 'internal scratch']
  %s0 = inlined_call_operand.hbm [shape: bf16[16,32], index: 0, kind: input, shape index: {}]
  %s1 = inlined_call_operand.hbm [shape: bf16[32,128], index: 1, kind: input, shape index: {}]
  %s2 = inlined_call_operand.vmem [shape: f32[1,128], index: 2, kind: input, shape index: {}]
  %s3 = inlined_call_operand.hbm [shape: bf16[128,256], index: 3, kind: input, shape index: {}]
  %s4 = inlined_call_operand.vmem [shape: f32[1,256], index: 4, kind: input, shape index: {}]
  %s5 = inlined_call_operand.hbm [shape: bf16[256,128], index: 5, kind: input, shape index: {}]
  %s6 = inlined_call_operand.vmem [shape: f32[1,128], index: 6, kind: input, shape index: {}]
  %s7 = inlined_call_operand.hbm [shape: bf16[128,128], index: 7, kind: input, shape index: {}]
  %s8 = inlined_call_operand.vmem [shape: f32[1,128], index: 8, kind: input, shape index: {}]
  %s9 = inlined_call_operand.hbm [shape: f32[16,128], index: 9, kind: output, shape index: {}]
  %s10 = sld [smem:[#allocation0]]
  $region66: #{tpu_custom_call.1} parent=0
    _
  %s12 = ssub.s32 1, %s10
  %s13 = scalar_select 0, %s12, %s10
  $region1: #{tpu_custom_call.1} parent=0
    #allocation2 [shape = 'u8[4096]{0}', space=vmem, size = 0x1000, scoped, tag = 'input window, operand 0, single buffered']
    #allocation3 [shape = 's32[1]{0}', space=sflag, size = 0x4, scoped, tag = 'scoped memory for tpu_custom_call.1']
    #allocation4 [shape = 's32[1]{0}', space=sflag, size = 0x4, scoped, tag = 'scoped memory for tpu_custom_call.1']
    #allocation5 [shape = 'u8[8192]{0}', space=vmem, size = 0x2000, scoped, tag = 'input window, operand 1, single buffered']
    #allocation6 [shape = 's32[1]{0}', space=sflag, size = 0x4, scoped, tag = 'scoped memory for tpu_custom_call.1']
    #allocation7 [shape = 'u8[65536]{0}', space=vmem, size = 0x10000, scoped, tag = 'input window, operand 3, single buffered']
    #allocation8 [shape = 'u8[65536]{0}', space=vmem, size = 0x10000, scoped, tag = 'input window, operand 5, single buffered']
    #allocation9 [shape = 's32[1]{0}', space=sflag, size = 0x4, scoped, tag = 'scoped memory for tpu_custom_call.1']
    #allocation10 [shape = 'u8[32768]{0}', space=vmem, size = 0x8000, scoped, tag = 'input window, operand 7, single buffered']
    #allocation11 [shape = 'u8[8192]{0}', space=vmem, size = 0x2000, scoped, tag = 'output window, operand 0, single buffered']
    %14 = vsyncpa [#allocation3], 0
    %15 = vsyncpa [#allocation6], 0
    %16 = vsyncpa [#allocation9], 0
    %17 = vsyncpa [#allocation4], 0
    // Predicated region
    $region2: #{tpu_custom_call.1} parent=1 // pred_check
      _
    $region3: #{tpu_custom_call.1} parent=1 // pred_check_branch
      %19 = sbr.rel (0) target = $region5
    $region4: #{tpu_custom_call.1} parent=1 // pred_region
      %21 = vsyncadd [#allocation3], 0
      %s22 = sshll.u32 %s0, 4
      %s23 = int_to_ptr.hbm [resolvable:$true] %s22
      %s24 = sshll.u32 [#allocation2], 4
      %s25 = int_to_ptr.vmem [resolvable:$true] %s24
      %30 = dma.hbm_to_vmem [thread:$0]  %s23, 128, %s25, [#allocation3], 64, 64, 4
    $region5: #{tpu_custom_call.1} parent=1 // pred_fallthru
      _
    // Predicated region
    $region6: #{tpu_custom_call.1} parent=1 // pred_check
      _
    $region7: #{tpu_custom_call.1} parent=1 // pred_check_branch
      %32 = sbr.rel (0) target = $region9
    $region8: #{tpu_custom_call.1} parent=1 // pred_region
      %34 = vsyncadd [#allocation6], 0
      %s35 = sshll.u32 %s1, 4
      %s36 = int_to_ptr.hbm [resolvable:$true] %s35
      %s37 = sshll.u32 [#allocation5], 4
      %s38 = int_to_ptr.vmem [resolvable:$true] %s37
      %43 = dma.hbm_to_vmem [thread:$0]  %s36, 256, %s38, [#allocation6], 64, 64, 4
    $region9: #{tpu_custom_call.1} parent=1 // pred_fallthru
      _
    // Predicated region
    $region10: #{tpu_custom_call.1} parent=1 // pred_check
      _
    $region11: #{tpu_custom_call.1} parent=1 // pred_check_branch
      %45 = sbr.rel (0) target = $region13
    $region12: #{tpu_custom_call.1} parent=1 // pred_region
      _
    $region13: #{tpu_custom_call.1} parent=1 // pred_fallthru
      _
    // Predicated region
    $region14: #{tpu_custom_call.1} parent=1 // pred_check
      _
    $region15: #{tpu_custom_call.1} parent=1 // pred_check_branch
      %47 = sbr.rel (0) target = $region17
    $region16: #{tpu_custom_call.1} parent=1 // pred_region
      %49 = vsyncadd [#allocation6], 0
      %s50 = sshll.u32 %s3, 4
      %s51 = int_to_ptr.hbm [resolvable:$true] %s50
      %s52 = sshll.u32 [#allocation7], 4
      %s53 = int_to_ptr.vmem [resolvable:$true] %s52
      %58 = dma.hbm_to_vmem [thread:$0]  %s51, 2048, %s53, [#allocation6], 128, 128, 8
    $region17: #{tpu_custom_call.1} parent=1 // pred_fallthru
      _
    // Predicated region
    $region18: #{tpu_custom_call.1} parent=1 // pred_check
      _
    $region19: #{tpu_custom_call.1} parent=1 // pred_check_branch
      %60 = sbr.rel (0) target = $region21
    $region20: #{tpu_custom_call.1} parent=1 // pred_region
      _
    $region21: #{tpu_custom_call.1} parent=1 // pred_fallthru
      _
    // Predicated region
    $region22: #{tpu_custom_call.1} parent=1 // pred_check
      _
    $region23: #{tpu_custom_call.1} parent=1 // pred_check_branch
      %62 = sbr.rel (0) target = $region25
    $region24: #{tpu_custom_call.1} parent=1 // pred_region
      %64 = vsyncadd [#allocation9], 0
      %s65 = sshll.u32 %s5, 4
      %s66 = int_to_ptr.hbm [resolvable:$true] %s65
      %s67 = sshll.u32 [#allocation8], 4
      %s68 = int_to_ptr.vmem [resolvable:$true] %s67
      %73 = dma.hbm_to_vmem [thread:$0]  %s66, 2048, %s68, [#allocation9], 64, 64, 4
    $region25: #{tpu_custom_call.1} parent=1 // pred_fallthru
      _
    // Predicated region
    $region26: #{tpu_custom_call.1} parent=1 // pred_check
      _
    $region27: #{tpu_custom_call.1} parent=1 // pred_check_branch
      %75 = sbr.rel (0) target = $region29
    $region28: #{tpu_custom_call.1} parent=1 // pred_region
      _
    $region29: #{tpu_custom_call.1} parent=1 // pred_fallthru
      _
    // Predicated region
    $region30: #{tpu_custom_call.1} parent=1 // pred_check
      _
    $region31: #{tpu_custom_call.1} parent=1 // pred_check_branch
      %77 = sbr.rel (0) target = $region33
    $region32: #{tpu_custom_call.1} parent=1 // pred_region
      %79 = vsyncadd [#allocation9], 0
      %s80 = sshll.u32 %s7, 4
      %s81 = int_to_ptr.hbm [resolvable:$true] %s80
      %s82 = sshll.u32 [#allocation10], 4
      %s83 = int_to_ptr.vmem [resolvable:$true] %s82
      %88 = dma.hbm_to_vmem [thread:$0]  %s81, 1024, %s83, [#allocation9], 64, 64, 4
    $region33: #{tpu_custom_call.1} parent=1 // pred_fallthru
      _
    // Predicated region
    $region34: #{tpu_custom_call.1} parent=1 // pred_check
      _
    $region35: #{tpu_custom_call.1} parent=1 // pred_check_branch
      %90 = sbr.rel (0) target = $region37
    $region36: #{tpu_custom_call.1} parent=1 // pred_region
      _
    $region37: #{tpu_custom_call.1} parent=1 // pred_fallthru
      _
    // Predicated region
    $region38: #{tpu_custom_call.1} parent=1 // pred_check
      _
    $region39: #{tpu_custom_call.1} parent=1 // pred_check_branch
      %92 = sbr.rel (0) target = $region41
    $region40: #{tpu_custom_call.1} parent=1 // pred_region
      %94 = dma.done [#allocation3], 128
    $region41: #{tpu_custom_call.1} parent=1 // pred_fallthru
      _
    // Predicated region
    $region42: #{tpu_custom_call.1} parent=1 // pred_check
      _
    $region43: #{tpu_custom_call.1} parent=1 // pred_check_branch
      %96 = sbr.rel (0) target = $region45
    $region44: #{tpu_custom_call.1} parent=1 // pred_region
      %98 = dma.done [#allocation6], 256
    $region45: #{tpu_custom_call.1} parent=1 // pred_fallthru
      _
    // Predicated region
    $region46: #{tpu_custom_call.1} parent=1 // pred_check
      _
    $region47: #{tpu_custom_call.1} parent=1 // pred_check_branch
      %100 = sbr.rel (0) target = $region49
    $region48: #{tpu_custom_call.1} parent=1 // pred_region
      %102 = dma.done [#allocation6], 2048
    $region49: #{tpu_custom_call.1} parent=1 // pred_fallthru
      _
    // Predicated region
    $region50: #{tpu_custom_call.1} parent=1 // pred_check
      _
    $region51: #{tpu_custom_call.1} parent=1 // pred_check_branch
      %104 = sbr.rel (0) target = $region53
    $region52: #{tpu_custom_call.1} parent=1 // pred_region
      %106 = dma.done [#allocation9], 2048
    $region53: #{tpu_custom_call.1} parent=1 // pred_fallthru
      _
    // Predicated region
    $region54: #{tpu_custom_call.1} parent=1 // pred_check
      _
    $region55: #{tpu_custom_call.1} parent=1 // pred_check_branch
      %108 = sbr.rel (0) target = $region57
    $region56: #{tpu_custom_call.1} parent=1 // pred_region
      %110 = dma.done [#allocation9], 1024
    $region57: #{tpu_custom_call.1} parent=1 // pred_fallthru
      _
    %v112 = vld [vmem:[#allocation2] sm:$0xf]
    %v113 = vld [vmem:[#allocation2 + $0x4] sm:$0xf]
    %v114 = vld [vmem:[#allocation5] sm:$0xf]
    %v115 = vld [vmem:[#allocation5 + $0x4] sm:$0xf]
    %v116 = vld [vmem:[#allocation5 + $0x8] sm:$0xf]
    %v117 = vld [vmem:[#allocation5 + $0xc] sm:$0xf]
    %v118 = vld [vmem:[%s2] sm:$0x1]
    %v120 = vperm.slane %v118, 0
    %v124 = vunpack.c.l.b16 %v112
    %v125 = vunpack.c.l.b16 %v113
    %v126 = vpack.c.b16 %v125, %v124
    %v131 = vunpack.c.l.b16 %v114
    %v132 = vunpack.c.l.b16 %v115
    %v133 = vunpack.c.l.b16 %v116
    %v134 = vunpack.c.l.b16 %v117
    %v135 = vpack.c.b16 %v132, %v131
    %v136 = vpack.c.b16 %v134, %v133
    %vm139 = vcmask 261120
    %v141 = vsel %vm139, %v126, 0
    %143 = vmatpush.bf16.msra.mxu0 0
    %144 = vmatpush.bf16.msra.mxu0 0
    %145 = vmatpush.bf16.msra.mxu0 0
    %146 = vmatpush.bf16.msra.mxu0 0
    %147 = vmatpush.bf16.msra.mxu0 0
    %148 = vmatpush.bf16.msra.mxu0 0
    %149 = vmatpush.bf16.msra.mxu0 %v136
    %150 = vmatpush.bf16.msra.mxu0 %v135
    %151 = vmatmul.bf16.gmra.mxu0 %v141
    %v152 = vpop.f32.mrf.mxu0
    %v153 = vadd.f32 %v120, %v152
    %v154 = vpop.f32.mrf.mxu0
    %v155 = vadd.f32 %v120, %v154
    %156 = vdwg.mxu0
    %v157 = vmax.f32 %v153, 0.0
    %v158 = vmax.f32 %v155, 0.0
    %v159 = vpack.c.bf16 %v158, %v157
    %v160 = vld [vmem:[#allocation7] sm:$0xff]
    %v161 = vld [vmem:[#allocation7 + $0x8] sm:$0xff]
    %v162 = vld [vmem:[#allocation7 + $0x10] sm:$0xff]
    %v163 = vld [vmem:[#allocation7 + $0x18] sm:$0xff]
    %v164 = vld [vmem:[#allocation7 + $0x20] sm:$0xff]
    %v165 = vld [vmem:[#allocation7 + $0x28] sm:$0xff]
    %v166 = vld [vmem:[#allocation7 + $0x30] sm:$0xff]
    %v167 = vld [vmem:[#allocation7 + $0x38] sm:$0xff]
    %v168 = vld [vmem:[#allocation7 + $0x40] sm:$0xff]
    %v169 = vld [vmem:[#allocation7 + $0x48] sm:$0xff]
    %v170 = vld [vmem:[#allocation7 + $0x50] sm:$0xff]
    %v171 = vld [vmem:[#allocation7 + $0x58] sm:$0xff]
    %v172 = vld [vmem:[#allocation7 + $0x60] sm:$0xff]
    %v173 = vld [vmem:[#allocation7 + $0x68] sm:$0xff]
    %v174 = vld [vmem:[#allocation7 + $0x70] sm:$0xff]
    %v175 = vld [vmem:[#allocation7 + $0x78] sm:$0xff]
    %v176 = vld [vmem:[%s4] sm:$0x3]
    %v178 = vperm.slane %v176, 0
    %v179 = vperm.slane %v176, 1
    %v198 = vunpack.c.l.b16 %v160
    %v199 = vunpack.c.h.b16 %v160
    %v200 = vunpack.c.l.b16 %v161
    %v201 = vunpack.c.h.b16 %v161
    %v202 = vunpack.c.l.b16 %v162
    %v203 = vunpack.c.h.b16 %v162
    %v204 = vunpack.c.l.b16 %v163
    %v205 = vunpack.c.h.b16 %v163
    %v206 = vunpack.c.l.b16 %v164
    %v207 = vunpack.c.h.b16 %v164
    %v208 = vunpack.c.l.b16 %v165
    %v209 = vunpack.c.h.b16 %v165
    %v210 = vunpack.c.l.b16 %v166
    %v211 = vunpack.c.h.b16 %v166
    %v212 = vunpack.c.l.b16 %v167
    %v213 = vunpack.c.h.b16 %v167
    %v214 = vunpack.c.l.b16 %v168
    %v215 = vunpack.c.h.b16 %v168
    %v216 = vunpack.c.l.b16 %v169
    %v217 = vunpack.c.h.b16 %v169
    %v218 = vunpack.c.l.b16 %v170
    %v219 = vunpack.c.h.b16 %v170
    %v220 = vunpack.c.l.b16 %v171
    %v221 = vunpack.c.h.b16 %v171
    %v222 = vunpack.c.l.b16 %v172
    %v223 = vunpack.c.h.b16 %v172
    %v224 = vunpack.c.l.b16 %v173
    %v225 = vunpack.c.h.b16 %v173
    %v226 = vunpack.c.l.b16 %v174
    %v227 = vunpack.c.h.b16 %v174
    %v228 = vunpack.c.l.b16 %v175
    %v229 = vunpack.c.h.b16 %v175
    %v230 = vpack.c.b16 %v200, %v198
    %v231 = vpack.c.b16 %v201, %v199
    %v232 = vpack.c.b16 %v204, %v202
    %v233 = vpack.c.b16 %v205, %v203
    %v234 = vpack.c.b16 %v208, %v206
    %v235 = vpack.c.b16 %v209, %v207
    %v236 = vpack.c.b16 %v212, %v210
    %v237 = vpack.c.b16 %v213, %v211
    %v238 = vpack.c.b16 %v216, %v214
    %v239 = vpack.c.b16 %v217, %v215
    %v240 = vpack.c.b16 %v220, %v218
    %v241 = vpack.c.b16 %v221, %v219
    %v242 = vpack.c.b16 %v224, %v222
    %v243 = vpack.c.b16 %v225, %v223
    %v244 = vpack.c.b16 %v228, %v226
    %v245 = vpack.c.b16 %v229, %v227
    %262 = vmatpush.bf16.msra.mxu0 %v244
    %263 = vmatpush.bf16.msra.mxu0 %v242
    %264 = vmatpush.bf16.msra.mxu0 %v240
    %265 = vmatpush.bf16.msra.mxu0 %v238
    %266 = vmatpush.bf16.msra.mxu0 %v236
    %267 = vmatpush.bf16.msra.mxu0 %v234
    %268 = vmatpush.bf16.msra.mxu0 %v232
    %269 = vmatpush.bf16.msra.mxu0 %v230
    %270 = vmatmul.bf16.gmra.mxu0 %v159
    %v271 = vpop.f32.mrf.mxu0
    %v272 = vadd.f32 %v178, %v271
    %v273 = vpop.f32.mrf.mxu0
    %v274 = vadd.f32 %v178, %v273
    %275 = vdwg.mxu0
    %276 = vmatpush.bf16.msra.mxu0 %v245
    %277 = vmatpush.bf16.msra.mxu0 %v243
    %278 = vmatpush.bf16.msra.mxu0 %v241
    %279 = vmatpush.bf16.msra.mxu0 %v239
    %280 = vmatpush.bf16.msra.mxu0 %v237
    %281 = vmatpush.bf16.msra.mxu0 %v235
    %282 = vmatpush.bf16.msra.mxu0 %v233
    %283 = vmatpush.bf16.msra.mxu0 %v231
    %284 = vmatmul.bf16.gmra.mxu0 %v159
    %v285 = vpop.f32.mrf.mxu0
    %v286 = vadd.f32 %v179, %v285
    %v287 = vpop.f32.mrf.mxu0
    %v288 = vadd.f32 %v179, %v287
    %289 = vdwg.mxu0
    %v290 = vmax.f32 %v272, 0.0
    %v291 = vmax.f32 %v286, 0.0
    %v292 = vmax.f32 %v274, 0.0
    %v293 = vmax.f32 %v288, 0.0
    %v294 = vpack.c.bf16 %v292, %v290
    %v295 = vpack.c.bf16 %v293, %v291
    %v296 = vld [vmem:[#allocation8] sm:$0xf]
    %v297 = vld [vmem:[#allocation8 + $0x4] sm:$0xf]
    %v298 = vld [vmem:[#allocation8 + $0x8] sm:$0xf]
    %v299 = vld [vmem:[#allocation8 + $0xc] sm:$0xf]
    %v300 = vld [vmem:[#allocation8 + $0x10] sm:$0xf]
    %v301 = vld [vmem:[#allocation8 + $0x14] sm:$0xf]
    %v302 = vld [vmem:[#allocation8 + $0x18] sm:$0xf]
    %v303 = vld [vmem:[#allocation8 + $0x1c] sm:$0xf]
    %v304 = vld [vmem:[#allocation8 + $0x20] sm:$0xf]
    %v305 = vld [vmem:[#allocation8 + $0x24] sm:$0xf]
    %v306 = vld [vmem:[#allocation8 + $0x28] sm:$0xf]
    %v307 = vld [vmem:[#allocation8 + $0x2c] sm:$0xf]
    %v308 = vld [vmem:[#allocation8 + $0x30] sm:$0xf]
    %v309 = vld [vmem:[#allocation8 + $0x34] sm:$0xf]
    %v310 = vld [vmem:[#allocation8 + $0x38] sm:$0xf]
    %v311 = vld [vmem:[#allocation8 + $0x3c] sm:$0xf]
    %v312 = vld [vmem:[#allocation8 + $0x40] sm:$0xf]
    %v313 = vld [vmem:[#allocation8 + $0x44] sm:$0xf]
    %v314 = vld [vmem:[#allocation8 + $0x48] sm:$0xf]
    %v315 = vld [vmem:[#allocation8 + $0x4c] sm:$0xf]
    %v316 = vld [vmem:[#allocation8 + $0x50] sm:$0xf]
    %v317 = vld [vmem:[#allocation8 + $0x54] sm:$0xf]
    %v318 = vld [vmem:[#allocation8 + $0x58] sm:$0xf]
    %v319 = vld [vmem:[#allocation8 + $0x5c] sm:$0xf]
    %v320 = vld [vmem:[#allocation8 + $0x60] sm:$0xf]
    %v321 = vld [vmem:[#allocation8 + $0x64] sm:$0xf]
    %v322 = vld [vmem:[#allocation8 + $0x68] sm:$0xf]
    %v323 = vld [vmem:[#allocation8 + $0x6c] sm:$0xf]
    %v324 = vld [vmem:[#allocation8 + $0x70] sm:$0xf]
    %v325 = vld [vmem:[#allocation8 + $0x74] sm:$0xf]
    %v326 = vld [vmem:[#allocation8 + $0x78] sm:$0xf]
    %v327 = vld [vmem:[#allocation8 + $0x7c] sm:$0xf]
    %v328 = vld [vmem:[%s6] sm:$0x1]
    %v330 = vperm.slane %v328, 0
    %v364 = vunpack.c.l.b16 %v296
    %v365 = vunpack.c.l.b16 %v297
    %v366 = vunpack.c.l.b16 %v298
    %v367 = vunpack.c.l.b16 %v299
    %v368 = vunpack.c.l.b16 %v300
    %v369 = vunpack.c.l.b16 %v301
    %v370 = vunpack.c.l.b16 %v302
    %v371 = vunpack.c.l.b16 %v303
    %v372 = vunpack.c.l.b16 %v304
    %v373 = vunpack.c.l.b16 %v305
    %v374 = vunpack.c.l.b16 %v306
    %v375 = vunpack.c.l.b16 %v307
    %v376 = vunpack.c.l.b16 %v308
    %v377 = vunpack.c.l.b16 %v309
    %v378 = vunpack.c.l.b16 %v310
    %v379 = vunpack.c.l.b16 %v311
    %v380 = vunpack.c.l.b16 %v312
    %v381 = vunpack.c.l.b16 %v313
    %v382 = vunpack.c.l.b16 %v314
    %v383 = vunpack.c.l.b16 %v315
    %v384 = vunpack.c.l.b16 %v316
    %v385 = vunpack.c.l.b16 %v317
    %v386 = vunpack.c.l.b16 %v318
    %v387 = vunpack.c.l.b16 %v319
    %v388 = vunpack.c.l.b16 %v320
    %v389 = vunpack.c.l.b16 %v321
    %v390 = vunpack.c.l.b16 %v322
    %v391 = vunpack.c.l.b16 %v323
    %v392 = vunpack.c.l.b16 %v324
    %v393 = vunpack.c.l.b16 %v325
    %v394 = vunpack.c.l.b16 %v326
    %v395 = vunpack.c.l.b16 %v327
    %v396 = vpack.c.b16 %v365, %v364
    %v397 = vpack.c.b16 %v367, %v366
    %v398 = vpack.c.b16 %v369, %v368
    %v399 = vpack.c.b16 %v371, %v370
    %v400 = vpack.c.b16 %v373, %v372
    %v401 = vpack.c.b16 %v375, %v374
    %v402 = vpack.c.b16 %v377, %v376
    %v403 = vpack.c.b16 %v379, %v378
    %v404 = vpack.c.b16 %v381, %v380
    %v405 = vpack.c.b16 %v383, %v382
    %v406 = vpack.c.b16 %v385, %v384
    %v407 = vpack.c.b16 %v387, %v386
    %v408 = vpack.c.b16 %v389, %v388
    %v409 = vpack.c.b16 %v391, %v390
    %v410 = vpack.c.b16 %v393, %v392
    %v411 = vpack.c.b16 %v395, %v394
    %428 = vmatpush.bf16.msra.mxu0 %v403
    %429 = vmatpush.bf16.msra.mxu0 %v402
    %430 = vmatpush.bf16.msra.mxu0 %v401
    %431 = vmatpush.bf16.msra.mxu0 %v400
    %432 = vmatpush.bf16.msra.mxu0 %v399
    %433 = vmatpush.bf16.msra.mxu0 %v398
    %434 = vmatpush.bf16.msra.mxu0 %v397
    %435 = vmatpush.bf16.msra.mxu0 %v396
    %436 = vmatmul.bf16.gmra.mxu0 %v294
    %v437 = vpop.f32.mrf.mxu0
    %v438 = vadd.f32 %v330, %v437
    %v439 = vpop.f32.mrf.mxu0
    %v440 = vadd.f32 %v330, %v439
    %441 = vdwg.mxu0
    %442 = vmatpush.bf16.msra.mxu0 %v411
    %443 = vmatpush.bf16.msra.mxu0 %v410
    %444 = vmatpush.bf16.msra.mxu0 %v409
    %445 = vmatpush.bf16.msra.mxu0 %v408
    %446 = vmatpush.bf16.msra.mxu0 %v407
    %447 = vmatpush.bf16.msra.mxu0 %v406
    %448 = vmatpush.bf16.msra.mxu0 %v405
    %449 = vmatpush.bf16.msra.mxu0 %v404
    %450 = vmatmul.bf16.gmra.mxu0 %v295
    %v451 = vpop.f32.mrf.mxu0
    %v452 = vadd.f32 %v438, %v451
    %v453 = vpop.f32.mrf.mxu0
    %v454 = vadd.f32 %v440, %v453
    %455 = vdwg.mxu0
    %v456 = vmax.f32 %v452, 0.0
    %v457 = vmax.f32 %v454, 0.0
    %v458 = vpack.c.bf16 %v457, %v456
    %v459 = vld [vmem:[#allocation10] sm:$0xf]
    %v460 = vld [vmem:[#allocation10 + $0x4] sm:$0xf]
    %v461 = vld [vmem:[#allocation10 + $0x8] sm:$0xf]
    %v462 = vld [vmem:[#allocation10 + $0xc] sm:$0xf]
    %v463 = vld [vmem:[#allocation10 + $0x10] sm:$0xf]
    %v464 = vld [vmem:[#allocation10 + $0x14] sm:$0xf]
    %v465 = vld [vmem:[#allocation10 + $0x18] sm:$0xf]
    %v466 = vld [vmem:[#allocation10 + $0x1c] sm:$0xf]
    %v467 = vld [vmem:[#allocation10 + $0x20] sm:$0xf]
    %v468 = vld [vmem:[#allocation10 + $0x24] sm:$0xf]
    %v469 = vld [vmem:[#allocation10 + $0x28] sm:$0xf]
    %v470 = vld [vmem:[#allocation10 + $0x2c] sm:$0xf]
    %v471 = vld [vmem:[#allocation10 + $0x30] sm:$0xf]
    %v472 = vld [vmem:[#allocation10 + $0x34] sm:$0xf]
    %v473 = vld [vmem:[#allocation10 + $0x38] sm:$0xf]
    %v474 = vld [vmem:[#allocation10 + $0x3c] sm:$0xf]
    %v475 = vld [vmem:[%s8] sm:$0x1]
    %v477 = vperm.slane %v475, 0
    %v495 = vunpack.c.l.b16 %v459
    %v496 = vunpack.c.l.b16 %v460
    %v497 = vunpack.c.l.b16 %v461
    %v498 = vunpack.c.l.b16 %v462
    %v499 = vunpack.c.l.b16 %v463
    %v500 = vunpack.c.l.b16 %v464
    %v501 = vunpack.c.l.b16 %v465
    %v502 = vunpack.c.l.b16 %v466
    %v503 = vunpack.c.l.b16 %v467
    %v504 = vunpack.c.l.b16 %v468
    %v505 = vunpack.c.l.b16 %v469
    %v506 = vunpack.c.l.b16 %v470
    %v507 = vunpack.c.l.b16 %v471
    %v508 = vunpack.c.l.b16 %v472
    %v509 = vunpack.c.l.b16 %v473
    %v510 = vunpack.c.l.b16 %v474
    %v511 = vpack.c.b16 %v496, %v495
    %v512 = vpack.c.b16 %v498, %v497
    %v513 = vpack.c.b16 %v500, %v499
    %v514 = vpack.c.b16 %v502, %v501
    %v515 = vpack.c.b16 %v504, %v503
    %v516 = vpack.c.b16 %v506, %v505
    %v517 = vpack.c.b16 %v508, %v507
    %v518 = vpack.c.b16 %v510, %v509
    %527 = vmatpush.bf16.msra.mxu0 %v518
    %528 = vmatpush.bf16.msra.mxu0 %v517
    %529 = vmatpush.bf16.msra.mxu0 %v516
    %530 = vmatpush.bf16.msra.mxu0 %v515
    %531 = vmatpush.bf16.msra.mxu0 %v514
    %532 = vmatpush.bf16.msra.mxu0 %v513
    %533 = vmatpush.bf16.msra.mxu0 %v512
    %534 = vmatpush.bf16.msra.mxu0 %v511
    %535 = vmatmul.bf16.gmra.mxu0 %v458
    %v536 = vpop.f32.mrf.mxu0
    %v537 = vadd.f32 %v477, %v536
    %v538 = vpop.f32.mrf.mxu0
    %v539 = vadd.f32 %v477, %v538
    %540 = vdwg.mxu0
    %v541 = vmax.f32 %v537, 0.0
    %v542 = vmax.f32 %v539, 0.0
    %543 = vst [vmem:[#allocation11] sm:$0xff] %v541
    %544 = vst [vmem:[#allocation11 + $0x8] sm:$0xff] %v542
    // Predicated region
    $region58: #{tpu_custom_call.1} parent=1 // pred_check
      _
    $region59: #{tpu_custom_call.1} parent=1 // pred_check_branch
      %546 = sbr.rel (0) target = $region61
    $region60: #{tpu_custom_call.1} parent=1 // pred_region
      %548 = vsyncadd [#allocation4], 0
      %s549 = sshll.u32 [#allocation11], 4
      %s550 = int_to_ptr.vmem [resolvable:$true] %s549
      %s551 = sshll.u32 %s9, 4
      %s552 = int_to_ptr.hbm [resolvable:$true] %s551
      %557 = dma.vmem_to_hbm [thread:$0]  %s550, 256, %s552, [#allocation4], 128, 128, 8
    $region61: #{tpu_custom_call.1} parent=1 // pred_fallthru
      _
    // Predicated region
    $region62: #{tpu_custom_call.1} parent=1 // pred_check
      _
    $region63: #{tpu_custom_call.1} parent=1 // pred_check_branch
      %559 = sbr.rel (0) target = $region65
    $region64: #{tpu_custom_call.1} parent=1 // pred_region
      %561 = dma.done [#allocation4], 256
    $region65: #{tpu_custom_call.1} parent=1 // pred_fallthru
      _
    %562 = vsyncpa [#allocation3], 1
    %563 = vsyncpa [#allocation6], 1
    %564 = vsyncpa [#allocation9], 1
    %565 = vsyncpa [#allocation4], 1

</llo_original>
